<compile_context>
chip_gen: v7x
topology: tpu7x:2x2x1
jax: 0.10.0
libtpu: 0.0.40
codegen_flags: <defaults>
</compile_context>

<pallas_src>
import math

import jax
import jax.numpy as jnp
import numpy as np
from jax.experimental import pallas as pl
from jax.experimental.pallas import tpu as pltpu

_KRON_MAX_PIXELS = 1024   # fused 2-D operator (kron) path: <= ~32x32 images
_MATMUL_MAX_DIM = 512     # separable matmul path (review: ~512 on v6e/v7x)


# ---------------------------------------------------------------------------
# Host-side (trace-time) helpers.
# ---------------------------------------------------------------------------

def _gaussian_taps(sigma, window=0):
    """Python-float taps, matching GaussianBlur2d.__init__ (static at trace time)."""
    if not window:
        window = max(math.ceil((sigma * 6 + 1) / 2) * 2 - 1, 3)
    window = int(window)
    if sigma:
        c = window // 2
        raw = [math.exp(-((i - c) ** 2) / (2.0 * float(sigma) ** 2))
               for i in range(window)]
        s = sum(raw)
        return [v / s for v in raw]
    return [1.0]


def _axis_matrix(size, taps, sp, mode):
    """Dense (size, size) matrix M with  out[dst] = sum_src in[src] * M[src, dst].

    The padding mode is folded into the matrix.  For 'constant' mode the
    out-of-range taps are simply dropped (a nonzero pad value is handled
    exactly in the kernel via  out = M @ (x - value) + value).
    """
    K = len(taps)
    m = np.zeros((size, size), np.float64)
    for dst in range(size):
        for k in range(K):
            idx = dst - sp + k                       # index into the unpadded axis
            if 0 <= idx < size:
                src = idx
            elif mode == "reflect":
                src = -idx if idx < 0 else 2 * size - 2 - idx
            elif mode in ("replicate", "edge"):
                src = 0 if idx < 0 else size - 1
            elif mode in ("circular", "wrap"):
                src = idx % size
            elif mode == "constant":
                continue                             # value handled via shift trick
            else:
                raise ValueError(f"unsupported padding mode: {mode}")
            m[src, dst] += taps[k]
    return m


def _round_up(v, m):
    return -(-v // m) * m


def _vmem_capacity_bytes():
    """Physical VMEM per TensorCore; conservative 64 MiB (v7x) if unknown."""
    try:
        cap = getattr(pltpu.get_tpu_info(), "vmem_capacity_bytes", None)
        if cap:
            return int(cap)
    except Exception:
        pass
    return 64 * 1024 * 1024


def _choose_batch(nc, per_img_bytes, fixed_bytes, sublane, budget_bytes,
                  block_batch_is_sublane):
    """Images per grid step, sized against the VMEM budget and (8/16,128) layout."""
    usable = max(budget_bytes - fixed_bytes, per_img_bytes)
    b = int(max(1, min(nc, usable // max(per_img_bytes, 1))))
    # Keep ~4 grid steps when there is enough work: pipelines the DMA on every
    # generation and gives the "parallel" axis something to shard across v7x's
    # two TensorCores (no forced halving on single-TC v5e/v6e).
    if nc >= 4 * sublane and b * 4 > nc:
        b = -(-nc // 4)
    if block_batch_is_sublane and b < nc:
        # 2-D blocks: the batch axis is the sublane axis -> keep it aligned.
        b = max(sublane, (b // sublane) * sublane)
    return min(b, nc)


# ---------------------------------------------------------------------------
# Path 1: tiny images -> one fused MXU matmul against kron(Mh, Mw).
# ---------------------------------------------------------------------------

def _blur_kron(xf, h, w, mh, mw, const_shift, value, sublane, budget, vmem_limit):
    nc, hw = xf.shape
    in_it = jnp.dtype(xf.dtype).itemsize
    m2 = jnp.asarray(np.kron(mh, mw), jnp.float32)                 # (hw, hw)

    hw_lane = _round_up(hw, 128)
    per_img = hw_lane * (4 * in_it + 12)        # 2x in + 2x out buffers + ~3 f32 temps
    fixed = 2 * _round_up(hw, 8) * hw_lane * 4  # resident (double-buffered) kron matrix
    bb = _choose_batch(nc, per_img, fixed, sublane, budget, True)

    def kernel(x_ref, m_ref, o_ref):
        xv = x_ref[...].astype(jnp.float32)
        if const_shift:
            xv = xv - value
        out = jax.lax.dot_general(xv, m_ref[...], (((1,), (0,)), ((), ())),
                                  preferred_element_type=jnp.float32)
        if const_shift:
            out = out + value
        o_ref[...] = out.astype(o_ref.dtype)

    return pl.pallas_call(
        kernel,
        out_shape=jax.ShapeDtypeStruct((nc, hw), xf.dtype),
        grid_spec=pltpu.PrefetchScalarGridSpec(
            num_scalar_prefetch=0,
            grid=(pl.cdiv(nc, bb),),
            in_specs=[pl.BlockSpec((bb, hw), lambda i: (i, 0)),
                      pl.BlockSpec((hw, hw), lambda i: (0, 0))],
            out_specs=pl.BlockSpec((bb, hw), lambda i: (i, 0)),
        ),
        compiler_params=pltpu.CompilerParams(
            dimension_semantics=("parallel",),
            vmem_limit_bytes=vmem_limit),
    )(xf, m2)


# ---------------------------------------------------------------------------
# Path 2: moderate images -> two separable MXU matmuls (W pass, then H pass).
# ---------------------------------------------------------------------------

def _blur_separable(xi, h, w, mh, mw, const_shift, value, sublane, budget, vmem_limit):
    nc = xi.shape[0]
    in_it = jnp.dtype(xi.dtype).itemsize
    mwj = jnp.asarray(mw, jnp.float32)          # (w, w)
    mhj = jnp.asarray(mh, jnp.float32)          # (h, h)

    w_lane, h_lane = _round_up(w, 128), _round_up(h, 128)
    h_sub8, w_sub8 = _round_up(h, 8), _round_up(w, 8)
    per_img = (4 * in_it * _round_up(h, sublane) * w_lane       # 2x in + 2x out buffers
               + 3 * 4 * h_sub8 * w_lane                        # f32 temps, (h, w) layout
               + 3 * 4 * w_sub8 * h_lane)                       # f32 temps, (w, h) layout
    fixed = 2 * 4 * (w_sub8 * w_lane + h_sub8 * h_lane)         # resident Mw, Mh
    bb = _choose_batch(nc, per_img, fixed, sublane, budget, False)

    def kernel(x_ref, mw_ref, mh_ref, o_ref):
        xv = x_ref[...].astype(jnp.float32)                      # (bb, h, w)
        if const_shift:
            xv = xv - value
        hp = jnp.dot(xv.reshape(bb * h, w), mw_ref[...],
                     preferred_element_type=jnp.float32).reshape(bb, h, w)
        hpt = jnp.swapaxes(hp, 1, 2)                             # (bb, w, h) minor vxpose
        vp = jnp.dot(hpt.reshape(bb * w, h), mh_ref[...],
                     preferred_element_type=jnp.float32).reshape(bb, w, h)
        out = jnp.swapaxes(vp, 1, 2)                             # (bb, h, w)
        if const_shift:
            out = out + value
        o_ref[...] = out.astype(o_ref.dtype)

    return pl.pallas_call(
        kernel,
        out_shape=jax.ShapeDtypeStruct((nc, h, w), xi.dtype),
        grid_spec=pltpu.PrefetchScalarGridSpec(
            num_scalar_prefetch=0,
            grid=(pl.cdiv(nc, bb),),
            in_specs=[pl.BlockSpec((bb, h, w), lambda i: (i, 0, 0)),
                      pl.BlockSpec((w, w), lambda i: (0, 0)),
                      pl.BlockSpec((h, h), lambda i: (0, 0))],
            out_specs=pl.BlockSpec((bb, h, w), lambda i: (i, 0, 0)),
        ),
        compiler_params=pltpu.CompilerParams(
            dimension_semantics=("parallel",),
            vmem_limit_bytes=vmem_limit),
    )(xi, mwj, mhj)


# ---------------------------------------------------------------------------
# Path 3: fallback tap-loop path (very large images, or K == 1 identity).
# ---------------------------------------------------------------------------

def _pad_axis(a, axis, sp, ep, mode, value):
    """In-kernel border construction along `axis` (1=H, 2=W) of a (B, H, W) value."""
    if sp == 0 and ep == 0:
        return a
    size = a.shape[axis]

    def take(idx):
        return a[:, idx:idx + 1, :] if axis == 1 else a[:, :, idx:idx + 1]

    def span(start, length):
        return a[:, start:start + length, :] if axis == 1 else a[:, :, start:start + length]

    def bcast(piece, length):
        shp = list(a.shape)
        shp[axis] = length
        return jnp.broadcast_to(piece, tuple(shp))

    if mode == "constant":
        shp = list(a.shape)
        left = [jnp.full(tuple(shp[:axis] + [sp] + shp[axis + 1:]), value, a.dtype)] if sp else []
        right = [jnp.full(tuple(shp[:axis] + [ep] + shp[axis + 1:]), value, a.dtype)] if ep else []
    elif mode == "reflect":
        left = [take(sp - i) for i in range(sp)]
        right = [take(size - 2 - i) for i in range(ep)]
    elif mode in ("replicate", "edge"):
        left = [bcast(take(0), sp)] if sp else []
        right = [bcast(take(size - 1), ep)] if ep else []
    elif mode in ("circular", "wrap"):
        left = [span(size - sp, sp)] if sp else []
        right = [span(0, ep)] if ep else []
    else:
        raise ValueError(f"unsupported padding mode: {mode}")
    return jnp.concatenate(left + [a] + right, axis=axis)


def _conv_axis(padded, axis, out_len, taps, symmetric):
    """Cross-correlate along `axis` with static taps; exploits symmetry when valid."""
    K = len(taps)

    def sl(start):
        return (padded[:, start:start + out_len, :] if axis == 1
                else padded[:, :, start:start + out_len])

    if symmetric and K > 1:
        half = K // 2
        acc = sl(half) * taps[half]
        for k in range(half):
            acc = acc + (sl(k) + sl(K - 1 - k)) * taps[k]
    else:
        acc = sl(0) * taps[0]
        for k in range(1, K):
            acc = acc + sl(k) * taps[k]
    return acc


def _blur_slices(xi, h, w, taps, sp, ep, mode, value, sublane, budget, vmem_limit):
    """Tap-loop fallback.  Pass order: pad W -> conv W -> pad H -> conv H (exact
    for every supported mode since the taps sum to 1), so the horizontal pass
    never touches pad rows."""
    # TODO(synk): roll-based W pass (pltpu.roll + iota masks) and H-strip tiling
    #             with a (K-1)-row halo for images whose f32 working set > VMEM.
    nc = xi.shape[0]
    K = len(taps)
    in_it = jnp.dtype(xi.dtype).itemsize
    symmetric = (K % 2 == 1) and all(
        abs(taps[k] - taps[K - 1 - k]) < 1e-12 for k in range(K // 2))

    w_lane, wk_lane = _round_up(w, 128), _round_up(w + K - 1, 128)
    per_img = (4 * in_it * _round_up(h, sublane) * w_lane
               + 4 * (K + 4) * _round_up(h + K - 1, 8) * wk_lane)   # shifted-slice copies
    bb = _choose_batch(nc, per_img, 0, sublane, budget, False)

    def kernel(x_ref, o_ref):
        img = x_ref[...].astype(jnp.float32)              # (bb, h, w)
        pw = _pad_axis(img, 2, sp, ep, mode, value)       # (bb, h, w+K-1)
        hp = _conv_axis(pw, 2, w, taps, symmetric)        # (bb, h, w)
        ph = _pad_axis(hp, 1, sp, ep, mode, value)        # (bb, h+K-1, w)
        out = _conv_axis(ph, 1, h, taps, symmetric)       # (bb, h, w)
        o_ref[...] = out.astype(o_ref.dtype)

    return pl.pallas_call(
        kernel,
        out_shape=jax.ShapeDtypeStruct((nc, h, w), xi.dtype),
        grid_spec=pltpu.PrefetchScalarGridSpec(
            num_scalar_prefetch=0,
            grid=(pl.cdiv(nc, bb),),
            in_specs=[pl.BlockSpec((bb, h, w), lambda i: (i, 0, 0))],
            out_specs=pl.BlockSpec((bb, h, w), lambda i: (i, 0, 0)),
        ),
        compiler_params=pltpu.CompilerParams(
            dimension_semantics=("parallel",),
            vmem_limit_bytes=vmem_limit),
    )(xi)


# ---------------------------------------------------------------------------
# Public wrapper: matches GaussianBlur2d.forward.
# ---------------------------------------------------------------------------

def gaussian_blur2d(x, sigma, window=0, mode="reflect", value=0.0):
    """pad (mode) -> conv1d along W -> conv1d along H, f32 accumulation, I/O dtype kept."""
    n, c, h, w = x.shape
    taps = _gaussian_taps(sigma, window)
    K = len(taps)
    sp, ep = (K - 1) // 2, K // 2

    if mode not in ("reflect", "replicate", "edge", "circular", "wrap", "constant"):
        raise ValueError(f"unsupported padding mode: {mode}")
    if mode == "reflect" and max(sp, ep) >= min(h, w):
        raise ValueError("reflect padding requires window//2 < min(H, W)")
    if mode in ("circular", "wrap") and max(sp, ep) > min(h, w):
        raise ValueError("circular padding requires window//2 <= min(H, W)")

    nc = n * c
    xi = x.reshape(nc, h, w)                   # no host cast / pad: all done in-kernel
    in_it = jnp.dtype(x.dtype).itemsize
    sublane = 8 if in_it >= 4 else (16 if in_it == 2 else 32)

    # Generation-aware VMEM numbers: ~50% of physical for sizing the image batch,
    # ~75% (capped at 100 MiB) for the scoped limit handed to Mosaic.
    cap = _vmem_capacity_bytes()
    budget = cap // 2
    vmem_limit = int(min(cap * 3 // 4, 100 * 1024 * 1024))

    const_shift = (mode == "constant" and float(value) != 0.0 and (sp + ep) > 0)
    value_f = float(value)

    if K == 1:
        # sigma=0 -> taps=[1.0]: pure copy, no need for the MXU.
        out = _blur_slices(xi, h, w, taps, sp, ep, mode, value_f,
                           sublane, budget, vmem_limit)
    elif h * w <= _KRON_MAX_PIXELS:
        mh = _axis_matrix(h, taps, sp, mode)
        mw = _axis_matrix(w, taps, sp, mode)
        out = _blur_kron(x.reshape(nc, h * w), h, w, mh, mw, const_shift, value_f,
                         sublane, budget, vmem_limit)
    elif max(h, w) <= _MATMUL_MAX_DIM:
        mh = _axis_matrix(h, taps, sp, mode)
        mw = _axis_matrix(w, taps, sp, mode)
        out = _blur_separable(xi, h, w, mh, mw, const_shift, value_f,
                              sublane, budget, vmem_limit)
    else:
        out = _blur_slices(xi, h, w, taps, sp, ep, mode, value_f,
                           sublane, budget, vmem_limit)
    return out.reshape(n, c, h, w)


# ---------------------------------------------------------------------------
# Pure-JAX reference (host pad + tap loop) for correctness checking.
# ---------------------------------------------------------------------------

def _reference_blur(x, sigma, window=0, mode="reflect", value=0.0):
    taps = jnp.array(_gaussian_taps(sigma, window), jnp.float32)
    K = int(taps.shape[0])
    sp, ep = (K - 1) // 2, K // 2
    n, c, h, w = x.shape
    xi = x.reshape(n * c, h, w).astype(jnp.float32)
    pad = ((0, 0), (sp, ep), (sp, ep))
    if mode == "reflect":
        xp = jnp.pad(xi, pad, mode="reflect")
    elif mode in ("replicate", "edge"):
        xp = jnp.pad(xi, pad, mode="edge")
    elif mode in ("circular", "wrap"):
        xp = jnp.pad(xi, pad, mode="wrap")
    else:
        xp = jnp.pad(xi, pad, mode="constant", constant_values=value)
    acc = sum(taps[k] * xp[:, :, k:k + w] for k in range(K))
    out = sum(taps[k] * acc[:, k:k + h, :] for k in range(K))
    return out.reshape(n, c, h, w)


if __name__ == "__main__":
    key = jax.random.PRNGKey(0)
    key, sub = jax.random.split(key)
    x = jax.random.normal(key, (2, 4, 16, 16), dtype=jnp.float32)

    # reflect (default window -> 7 taps); tolerance allows MXU f32 accumulation
    y = jax.block_until_ready(gaussian_blur2d(x, sigma=1.0))
    assert y.shape == x.shape and y.dtype == x.dtype
    err = float(jnp.abs(y - _reference_blur(x, sigma=1.0)).max())
    assert err < 2e-3, ("reflect", err)

    # other border modes ('constant' exercises the in-kernel value-shift trick)
    for mode in ("replicate", "circular", "constant"):
        ym = jax.block_until_ready(gaussian_blur2d(x, sigma=1.0, mode=mode, value=0.5))
        em = float(jnp.abs(ym - _reference_blur(x, sigma=1.0, mode=mode, value=0.5)).max())
        assert em < 2e-3, (mode, em)

    # non-square spatial dims catch any H/W axis mix-up in the tap matrices
    x2 = jax.random.normal(sub, (1, 3, 12, 24), dtype=jnp.float32)
    y2 = jax.block_until_ready(gaussian_blur2d(x2, sigma=1.5))
    e2 = float(jnp.abs(y2 - _reference_blur(x2, sigma=1.5)).max())
    assert e2 < 2e-3, ("nonsquare", e2)

    # sigma=0 -> taps [1.0] -> exact identity (copy path, no MXU)
    y0 = jax.block_until_ready(gaussian_blur2d(x, sigma=0.0))
    assert jnp.allclose(y0, x, atol=1e-6), "sigma=0 should be identity"

    # bf16 I/O stays bf16 (f32 accumulation in-kernel)
    xb = x.astype(jnp.bfloat16)
    yb = jax.block_until_ready(gaussian_blur2d(xb, sigma=1.0))
    assert yb.dtype == jnp.bfloat16
    assert jnp.isfinite(yb.astype(jnp.float32)).all()

    print("KERNEL_OK")
</pallas_src>

<mosaic_0001>
module attributes {stable_mosaic.version = 11 : i64} {
  func.func @kernel(%arg0: i32, %arg1: memref<8x256xf32, #tpu.memory_space<vmem>>, %arg2: memref<256x256xf32, #tpu.memory_space<vmem>>, %arg3: memref<8x256xf32, #tpu.memory_space<vmem>>) attributes {dimension_semantics = [#tpu.dimension_semantics<parallel>], iteration_bounds = array<i64: 1>, scalar_prefetch = 0 : i64, scratch_operands = 0 : i64, tpu.core_type = #tpu.core_type<tc>, window_params = [{transform_indices = @transform_0, window_bounds = array<i64: 8, 256>}, {pipeline_mode = #tpu.pipeline_mode<synchronous>, transform_indices = @transform_1, window_bounds = array<i64: 256, 256>}, {transform_indices = @transform_2, window_bounds = array<i64: 8, 256>}]} {
    %c0 = arith.constant 0 : index
    %c0_0 = arith.constant 0 : index
    %0 = vector.load %arg1[%c0, %c0_0] : memref<8x256xf32, #tpu.memory_space<vmem>>, vector<8x256xf32>
    %c0_1 = arith.constant 0 : index
    %c0_2 = arith.constant 0 : index
    %1 = vector.load %arg2[%c0_1, %c0_2] : memref<256x256xf32, #tpu.memory_space<vmem>>, vector<256x256xf32>
    %cst = arith.constant dense<0.000000e+00> : vector<8x256xf32>
    %2 = tpu.matmul %0, %1, %cst {dimension_numbers = #tpu.dot_dimension_numbers<[1], [0], [0], [1], [0, 0, 1, 1], [], []>} : vector<8x256xf32>, vector<256x256xf32>, vector<8x256xf32> -> vector<8x256xf32>
    %c0_3 = arith.constant 0 : index
    %c0_4 = arith.constant 0 : index
    %3 = vector.load %arg3[%c0_3, %c0_4] : memref<8x256xf32, #tpu.memory_space<vmem>>, vector<8x256xf32>
    tpu.vector_store %arg3[%c0_3, %c0_4], %2 {strides = array<i32>} : memref<8x256xf32, #tpu.memory_space<vmem>>, vector<8x256xf32>,
    return
  }
  func.func @transform_0(%arg0: i32) -> (i32, i32) {
    %c0_i32 = arith.constant 0 : i32
    %c0_i32_0 = arith.constant 0 : i32
    return %arg0, %c0_i32 : i32, i32
  }
  func.func @transform_1(%arg0: i32) -> (i32, i32) {
    %c0_i32 = arith.constant 0 : i32
    %c0_i32_0 = arith.constant 0 : i32
    %c0_i32_1 = arith.constant 0 : i32
    return %c0_i32, %c0_i32_0 : i32, i32
  }
  func.func @transform_2(%arg0: i32) -> (i32, i32) {
    %c0_i32 = arith.constant 0 : i32
    %c0_i32_0 = arith.constant 0 : i32
    return %arg0, %c0_i32 : i32, i32
  }
}

</mosaic_0001>

<llo_original>
// kernel: tpu_custom_call.1
$region0: #{tpu_custom_call.1}
  #allocation0 [shape = 'u32[]', space=smem, size = 0x4, offset = 0x4, fixed_abs, tag = 'smem constant byte address 0x4 - core index']
  #allocation1 [shape = 'u32[144,128]{1,0:T(1,128)}', space=vmem, size = 0x12000, scoped, tag = 'internal scratch']
  %s0 = inlined_call_operand.hbm [shape: f32[8,256], index: 0, kind: input, shape index: {}]
  %s1 = inlined_call_operand.hbm [shape: f32[256,256], index: 1, kind: input, shape index: {}]
  %s2 = inlined_call_operand.hbm [shape: f32[8,256], index: 2, kind: output, shape index: {}]
  %s3 = sld [smem:[#allocation0]]
  $region26: #{tpu_custom_call.1} parent=0
    _
  %s5 = ssub.s32 1, %s3
  %s6 = scalar_select 0, %s5, %s3
  $region1: #{tpu_custom_call.1} parent=0
    #allocation2 [shape = 'u8[8192]{0}', space=vmem, size = 0x2000, scoped, tag = 'input window, operand 0, single buffered']
    #allocation3 [shape = 's32[1]{0}', space=sflag, size = 0x4, scoped, tag = 'scoped memory for tpu_custom_call.1']
    #allocation4 [shape = 's32[1]{0}', space=sflag, size = 0x4, scoped, tag = 'scoped memory for tpu_custom_call.1']
    #allocation5 [shape = 'u8[262144]{0}', space=vmem, size = 0x40000, scoped, tag = 'input window, operand 1, single buffered']
    #allocation6 [shape = 's32[1]{0}', space=sflag, size = 0x4, scoped, tag = 'scoped memory for tpu_custom_call.1']
    #allocation7 [shape = 'u8[8192]{0}', space=vmem, size = 0x2000, scoped, tag = 'output window, operand 0, single buffered']
    %7 = vsyncpa [#allocation3], 0
    %8 = vsyncpa [#allocation6], 0
    %9 = vsyncpa [#allocation4], 0
    // Predicated region
    $region2: #{tpu_custom_call.1} parent=1 // pred_check
      _
    $region3: #{tpu_custom_call.1} parent=1 // pred_check_branch
      %11 = sbr.rel (0) target = $region5
    $region4: #{tpu_custom_call.1} parent=1 // pred_region
      %s13 = ssub.s32 256, 256
      %14 = vsyncadd [#allocation3], %s13
      %s16 = sshll.u32 [#allocation2], 4
      %s17 = int_to_ptr.vmem [resolvable:$true] %s16
      %19 = dma.hbm_to_vmem [thread:$0]  %s0, 256, %s17, [#allocation3]
    $region5: #{tpu_custom_call.1} parent=1 // pred_fallthru
      _
    // Predicated region
    $region6: #{tpu_custom_call.1} parent=1 // pred_check
      _
    $region7: #{tpu_custom_call.1} parent=1 // pred_check_branch
      %21 = sbr.rel (0) target = $region9
    $region8: #{tpu_custom_call.1} parent=1 // pred_region
      %s23 = ssub.s32 8192, 8192
      %24 = vsyncadd [#allocation6], %s23
      %s25 = sshll.u32 [#allocation5], 4
      %s26 = int_to_ptr.vmem [resolvable:$true] %s25
      %31 = dma.hbm_to_vmem [thread:$0]  %s1, 8192, %s26, [#allocation6], 256, 256, 16
    $region9: #{tpu_custom_call.1} parent=1 // pred_fallthru
      _
    // Predicated region
    $region10: #{tpu_custom_call.1} parent=1 // pred_check
      _
    $region11: #{tpu_custom_call.1} parent=1 // pred_check_branch
      %33 = sbr.rel (0) target = $region13
    $region12: #{tpu_custom_call.1} parent=1 // pred_region
      %34 = dma.done [#allocation3], 256
    $region13: #{tpu_custom_call.1} parent=1 // pred_fallthru
      _
    // Predicated region
    $region14: #{tpu_custom_call.1} parent=1 // pred_check
      _
    $region15: #{tpu_custom_call.1} parent=1 // pred_check_branch
      %36 = sbr.rel (0) target = $region17
    $region16: #{tpu_custom_call.1} parent=1 // pred_region
      %37 = dma.done [#allocation6], 8192
    $region17: #{tpu_custom_call.1} parent=1 // pred_fallthru
      _
    %v38 = vld [vmem:[#allocation2] sm:$0xff]
    %v39 = vld [vmem:[#allocation2 + $0x8] sm:$0xff]
    %v40 = vld [vmem:[#allocation5] sm:$0xff]
    %v41 = vld [vmem:[#allocation5 + $0x8] sm:$0xff]
    %v42 = vld [vmem:[#allocation5 + $0x10] sm:$0xff]
    %v43 = vld [vmem:[#allocation5 + $0x18] sm:$0xff]
    %v44 = vld [vmem:[#allocation5 + $0x20] sm:$0xff]
    %v45 = vld [vmem:[#allocation5 + $0x28] sm:$0xff]
    %v46 = vld [vmem:[#allocation5 + $0x30] sm:$0xff]
    %v47 = vld [vmem:[#allocation5 + $0x38] sm:$0xff]
    %v48 = vld [vmem:[#allocation5 + $0x40] sm:$0xff]
    %v49 = vld [vmem:[#allocation5 + $0x48] sm:$0xff]
    %v50 = vld [vmem:[#allocation5 + $0x50] sm:$0xff]
    %v51 = vld [vmem:[#allocation5 + $0x58] sm:$0xff]
    %v52 = vld [vmem:[#allocation5 + $0x60] sm:$0xff]
    %v53 = vld [vmem:[#allocation5 + $0x68] sm:$0xff]
    %v54 = vld [vmem:[#allocation5 + $0x70] sm:$0xff]
    %v55 = vld [vmem:[#allocation5 + $0x78] sm:$0xff]
    %v56 = vld [vmem:[#allocation5 + $0x80] sm:$0xff]
    %v57 = vld [vmem:[#allocation5 + $0x88] sm:$0xff]
    %v58 = vld [vmem:[#allocation5 + $0x90] sm:$0xff]
    %v59 = vld [vmem:[#allocation5 + $0x98] sm:$0xff]
    %v60 = vld [vmem:[#allocation5 + $0xa0] sm:$0xff]
    %v61 = vld [vmem:[#allocation5 + $0xa8] sm:$0xff]
    %v62 = vld [vmem:[#allocation5 + $0xb0] sm:$0xff]
    %v63 = vld [vmem:[#allocation5 + $0xb8] sm:$0xff]
    %v64 = vld [vmem:[#allocation5 + $0xc0] sm:$0xff]
    %v65 = vld [vmem:[#allocation5 + $0xc8] sm:$0xff]
    %v66 = vld [vmem:[#allocation5 + $0xd0] sm:$0xff]
    %v67 = vld [vmem:[#allocation5 + $0xd8] sm:$0xff]
    %v68 = vld [vmem:[#allocation5 + $0xe0] sm:$0xff]
    %v69 = vld [vmem:[#allocation5 + $0xe8] sm:$0xff]
    %v70 = vld [vmem:[#allocation5 + $0xf0] sm:$0xff]
    %v71 = vld [vmem:[#allocation5 + $0xf8] sm:$0xff]
    %v72 = vld [vmem:[#allocation5 + $0x100] sm:$0xff]
    %v73 = vld [vmem:[#allocation5 + $0x108] sm:$0xff]
    %v74 = vld [vmem:[#allocation5 + $0x110] sm:$0xff]
    %v75 = vld [vmem:[#allocation5 + $0x118] sm:$0xff]
    %v76 = vld [vmem:[#allocation5 + $0x120] sm:$0xff]
    %v77 = vld [vmem:[#allocation5 + $0x128] sm:$0xff]
    %v78 = vld [vmem:[#allocation5 + $0x130] sm:$0xff]
    %v79 = vld [vmem:[#allocation5 + $0x138] sm:$0xff]
    %v80 = vld [vmem:[#allocation5 + $0x140] sm:$0xff]
    %v81 = vld [vmem:[#allocation5 + $0x148] sm:$0xff]
    %v82 = vld [vmem:[#allocation5 + $0x150] sm:$0xff]
    %v83 = vld [vmem:[#allocation5 + $0x158] sm:$0xff]
    %v84 = vld [vmem:[#allocation5 + $0x160] sm:$0xff]
    %v85 = vld [vmem:[#allocation5 + $0x168] sm:$0xff]
    %v86 = vld [vmem:[#allocation5 + $0x170] sm:$0xff]
    %v87 = vld [vmem:[#allocation5 + $0x178] sm:$0xff]
    %v88 = vld [vmem:[#allocation5 + $0x180] sm:$0xff]
    %v89 = vld [vmem:[#allocation5 + $0x188] sm:$0xff]
    %v90 = vld [vmem:[#allocation5 + $0x190] sm:$0xff]
    %v91 = vld [vmem:[#allocation5 + $0x198] sm:$0xff]
    %v92 = vld [vmem:[#allocation5 + $0x1a0] sm:$0xff]
    %v93 = vld [vmem:[#allocation5 + $0x1a8] sm:$0xff]
    %v94 = vld [vmem:[#allocation5 + $0x1b0] sm:$0xff]
    %v95 = vld [vmem:[#allocation5 + $0x1b8] sm:$0xff]
    %v96 = vld [vmem:[#allocation5 + $0x1c0] sm:$0xff]
    %v97 = vld [vmem:[#allocation5 + $0x1c8] sm:$0xff]
    %v98 = vld [vmem:[#allocation5 + $0x1d0] sm:$0xff]
    %v99 = vld [vmem:[#allocation5 + $0x1d8] sm:$0xff]
    %v100 = vld [vmem:[#allocation5 + $0x1e0] sm:$0xff]
    %v101 = vld [vmem:[#allocation5 + $0x1e8] sm:$0xff]
    %v102 = vld [vmem:[#allocation5 + $0x1f0] sm:$0xff]
    %v103 = vld [vmem:[#allocation5 + $0x1f8] sm:$0xff]
    %104 = vmatprep.subr.mxu0 %v41
    %105 = vmatpush1.msra.mxu0 %v40
    %106 = vmatprep.subr.mxu0 %v43
    %107 = vmatpush1.msra.mxu0 %v42
    %108 = vmatprep.subr.mxu0 %v45
    %109 = vmatpush1.msra.mxu0 %v44
    %110 = vmatprep.subr.mxu0 %v47
    %111 = vmatpush1.msra.mxu0 %v46
    %112 = vmatprep.subr.mxu0 %v49
    %113 = vmatpush1.msra.mxu0 %v48
    %114 = vmatprep.subr.mxu0 %v51
    %115 = vmatpush1.msra.mxu0 %v50
    %116 = vmatprep.subr.mxu0 %v53
    %117 = vmatpush1.msra.mxu0 %v52
    %118 = vmatprep.subr.mxu0 %v55
    %119 = vmatpush1.msra.mxu0 %v54
    %120 = vmatprep.subr.mxu0 %v57
    %121 = vmatpush1.msra.mxu0 %v56
    %122 = vmatprep.subr.mxu0 %v59
    %123 = vmatpush1.msra.mxu0 %v58
    %124 = vmatprep.subr.mxu0 %v61
    %125 = vmatpush1.msra.mxu0 %v60
    %126 = vmatprep.subr.mxu0 %v63
    %127 = vmatpush1.msra.mxu0 %v62
    %128 = vmatprep.subr.mxu0 %v65
    %129 = vmatpush1.msra.mxu0 %v64
    %130 = vmatprep.subr.mxu0 %v67
    %131 = vmatpush1.msra.mxu0 %v66
    %132 = vmatprep.subr.mxu0 %v69
    %133 = vmatpush1.msra.mxu0 %v68
    %134 = vmatprep.subr.mxu0 %v71
    %135 = vmatpush1.msra.mxu0 %v70
    %136 = vmatprep.subr.mxu0 %v73
    %137 = vmatpush1.msra.mxu0 %v72
    %138 = vmatprep.subr.mxu0 %v75
    %139 = vmatpush1.msra.mxu0 %v74
    %140 = vmatprep.subr.mxu0 %v77
    %141 = vmatpush1.msra.mxu0 %v76
    %142 = vmatprep.subr.mxu0 %v79
    %143 = vmatpush1.msra.mxu0 %v78
    %144 = vmatprep.subr.mxu0 %v81
    %145 = vmatpush1.msra.mxu0 %v80
    %146 = vmatprep.subr.mxu0 %v83
    %147 = vmatpush1.msra.mxu0 %v82
    %148 = vmatprep.subr.mxu0 %v85
    %149 = vmatpush1.msra.mxu0 %v84
    %150 = vmatprep.subr.mxu0 %v87
    %151 = vmatpush1.msra.mxu0 %v86
    %152 = vmatprep.subr.mxu0 %v89
    %153 = vmatpush1.msra.mxu0 %v88
    %154 = vmatprep.subr.mxu0 %v91
    %155 = vmatpush1.msra.mxu0 %v90
    %156 = vmatprep.subr.mxu0 %v93
    %157 = vmatpush1.msra.mxu0 %v92
    %158 = vmatprep.subr.mxu0 %v95
    %159 = vmatpush1.msra.mxu0 %v94
    %160 = vmatprep.subr.mxu0 %v97
    %161 = vmatpush1.msra.mxu0 %v96
    %162 = vmatprep.subr.mxu0 %v99
    %163 = vmatpush1.msra.mxu0 %v98
    %164 = vmatprep.subr.mxu0 %v101
    %165 = vmatpush1.msra.mxu0 %v100
    %166 = vmatprep.subr.mxu0 %v103
    %167 = vmatpush1.msra.mxu0 %v102
    %168 = vmatprep.mubr.f32.mxu0 %v39
    %169 = vmatmul.mubr.f32.gmra.mrb[0].mxu0 %v38
    %v170 = vpop.f32.mrb[0].mxu0
    %v171 = vadd.f32 0.0, %v170
    %v172 = vpop.f32.mrb[0].mxu0
    %v173 = vadd.f32 0.0, %v172
    %174 = vdwg.mxu0
    %175 = vst [vmem:[#allocation7] sm:$0xff] %v171
    %176 = vst [vmem:[#allocation7 + $0x8] sm:$0xff] %v173
    // Predicated region
    $region18: #{tpu_custom_call.1} parent=1 // pred_check
      _
    $region19: #{tpu_custom_call.1} parent=1 // pred_check_branch
      %178 = sbr.rel (0) target = $region21
    $region20: #{tpu_custom_call.1} parent=1 // pred_region
      %s180 = ssub.s32 256, 256
      %181 = vsyncadd [#allocation4], %s180
      %s183 = sshll.u32 [#allocation7], 4
      %s184 = int_to_ptr.vmem [resolvable:$true] %s183
      %186 = dma.vmem_to_hbm [thread:$0]  %s184, 256, %s2, [#allocation4]
    $region21: #{tpu_custom_call.1} parent=1 // pred_fallthru
      _
    // Predicated region
    $region22: #{tpu_custom_call.1} parent=1 // pred_check
      _
    $region23: #{tpu_custom_call.1} parent=1 // pred_check_branch
      %188 = sbr.rel (0) target = $region25
    $region24: #{tpu_custom_call.1} parent=1 // pred_region
      %189 = dma.done [#allocation4], 256
    $region25: #{tpu_custom_call.1} parent=1 // pred_fallthru
      _
    %190 = vsyncpa [#allocation3], 1
    %191 = vsyncpa [#allocation6], 1
    %192 = vsyncpa [#allocation4], 1

</llo_original>
